<compile_context>
chip_gen: v7x
topology: tpu7x:2x2x1
jax: 0.10.0
libtpu: 0.0.40
codegen_flags: <defaults>
</compile_context>

<pallas_src>
import math
import functools
import jax
import jax.numpy as jnp
from jax.experimental import pallas as pl
from jax.experimental.pallas import tpu as pltpu


def _round_up(x, m):
    return ((x + m - 1) // m) * m


def _pick_tile(padded_dim, base, cap):
    """Largest multiple of `base` that divides `padded_dim` and is <= cap."""
    cap = max(base, min(cap, padded_dim))
    best = base
    d = base
    while d <= cap:
        if padded_dim % d == 0:
            best = d
        d += base
    return best


def _linear_kernel_bias(x_ref, w_ref, b_ref, o_ref):
    # x_ref: (tm, tk)  w_ref: (tk, tn)  b_ref: (1, tn)  o_ref: (tm, tn) f32
    # o_ref's block index is independent of k -> resident accumulator.
    @pl.when(pl.program_id(2) == 0)
    def _():
        o_ref[...] = jnp.broadcast_to(b_ref[...], o_ref.shape)

    o_ref[...] += jnp.dot(x_ref[...], w_ref[...],
                          preferred_element_type=jnp.float32)


def _linear_kernel_nobias(x_ref, w_ref, o_ref):
    @pl.when(pl.program_id(2) == 0)
    def _():
        o_ref[...] = jnp.zeros_like(o_ref)

    o_ref[...] += jnp.dot(x_ref[...], w_ref[...],
                          preferred_element_type=jnp.float32)


@functools.partial(jax.jit, static_argnames=("tm_cap", "tn_cap", "tk_cap"))
def linear_forward(x, weight, bias=None, *, tm_cap=512, tn_cap=512, tk_cap=1024):
    """Forward pass equivalent to torch `functions.linear(x, weight, bias)`.

    x:      (B, in_features)             float32
    weight: (out_features, in_features)  float32 (PyTorch layout)
    bias:   (out_features,) float32 or None
    returns (B, out_features) float32
    """
    x = x.astype(jnp.float32)
    weight = weight.astype(jnp.float32)
    B, K = x.shape
    N, K2 = weight.shape
    assert K == K2, "weight in_features mismatch"

    # ---- alignment (NOT tile-multiple) padding targets -----------------------
    m_pad = _round_up(B, 8)      # sublane alignment
    n_pad = _round_up(N, 128)    # lane alignment
    k_pad = _round_up(K, 128)    # lane alignment

    # ---- tile sizes: divisors of the padded dims nearest the caps ------------
    tm = _pick_tile(m_pad, 8, tm_cap)
    tn = _pick_tile(n_pad, 128, tn_cap)
    tk = _pick_tile(k_pad, 128, tk_cap)

    # v7x megacore: expose >=2 blocks along a "parallel" axis when possible so
    # both TensorCores get work (otherwise one TC idles on a (1,1,Kt) grid).
    if m_pad // tm == 1 and n_pad // tn == 1:
        if n_pad >= 256:
            tn = _pick_tile(n_pad, 128, n_pad // 2)
        elif m_pad >= 16:
            tm = _pick_tile(m_pad, 8, m_pad // 2)

    # One-time weight transpose in the wrapper (fused by XLA with the pad copy
    # below); the kernel then contracts the minor dim of x with the MAJOR dim
    # of W^T -> plain MXU matmul, no in-loop weight-tile transpose.
    w_t = weight.T  # (K, N)

    # Pad only to 8/128 alignment. Zero-padded K contributes nothing; padded
    # M/N rows/cols are sliced off after the call.
    if (m_pad, k_pad) != (B, K):
        x = jnp.pad(x, ((0, m_pad - B), (0, k_pad - K)))
    if (k_pad, n_pad) != (K, N):
        w_t = jnp.pad(w_t, ((0, k_pad - K), (0, n_pad - N)))

    grid = (m_pad // tm, n_pad // tn, k_pad // tk)   # reduction (K) axis last

    x_spec = pl.BlockSpec((tm, tk), lambda i, j, k: (i, k))
    w_spec = pl.BlockSpec((tk, tn), lambda i, j, k: (k, j))
    o_spec = pl.BlockSpec((tm, tn), lambda i, j, k: (i, j))

    # VMEM budget derived from the actual (double-buffered) tile footprint,
    # capped at 48 MiB so it is safe on v7x (64 MiB physical) as well as
    # v5e/v6e (128 MiB physical).
    tile_bytes = 4 * (tm * tk + tk * tn + tm * tn + tn)
    vmem_limit = int(min(48 * 2**20, max(32 * 2**20, 3 * tile_bytes)))
    compiler_params = pltpu.CompilerParams(
        dimension_semantics=("parallel", "parallel", "arbitrary"),
        vmem_limit_bytes=vmem_limit,
    )
    cost = pl.CostEstimate(
        flops=2 * m_pad * n_pad * k_pad,
        bytes_accessed=4 * (m_pad * k_pad + k_pad * n_pad + m_pad * n_pad),
        transcendentals=0,
    )

    if bias is not None:
        b = bias.astype(jnp.float32).reshape(1, N)
        if n_pad != N:
            b = jnp.pad(b, ((0, 0), (0, n_pad - N)))
        out = pl.pallas_call(
            _linear_kernel_bias,
            out_shape=jax.ShapeDtypeStruct((m_pad, n_pad), jnp.float32),
            grid_spec=pltpu.PrefetchScalarGridSpec(
                num_scalar_prefetch=0,
                grid=grid,
                in_specs=[x_spec, w_spec,
                          pl.BlockSpec((1, tn), lambda i, j, k: (0, j))],
                out_specs=o_spec),
            compiler_params=compiler_params,
            cost_estimate=cost,
        )(x, w_t, b)
    else:
        # No zeros-bias allocation / DMA when bias is absent.
        out = pl.pallas_call(
            _linear_kernel_nobias,
            out_shape=jax.ShapeDtypeStruct((m_pad, n_pad), jnp.float32),
            grid_spec=pltpu.PrefetchScalarGridSpec(
                num_scalar_prefetch=0,
                grid=grid,
                in_specs=[x_spec, w_spec],
                out_specs=o_spec),
            compiler_params=compiler_params,
            cost_estimate=cost,
        )(x, w_t)

    return out[:B, :N]


def init_linear_params(key, in_features, out_features, bias=True):
    """Deterministic re-implementation of Linear.reset_parameters():
    Xavier-normal weights, bias ~ N(0, 1e-6)."""
    kw, kb = jax.random.split(key)
    std = math.sqrt(2.0 / (in_features + out_features))  # Xavier normal, gain=1
    weight = std * jax.random.normal(kw, (out_features, in_features), dtype=jnp.float32)
    if bias:
        b = 1e-06 * jax.random.normal(kb, (out_features,), dtype=jnp.float32)
    else:
        b = None
    return weight, b
# TODO(synk): backward() / param() bookkeeping of the original Module is out of
# scope for this forward-pass kernel.


if __name__ == "__main__":
    key = jax.random.PRNGKey(0)
    k_x, k_p, k_x2, k_p2 = jax.random.split(key, 4)

    # --- small shapes matching the module's demo (exercise padding path) ------
    batch, in_features, out_features = 8, 32, 16
    x = jax.random.normal(k_x, (batch, in_features), dtype=jnp.float32)
    weight, bias = init_linear_params(k_p, in_features, out_features, bias=True)

    y = jax.block_until_ready(linear_forward(x, weight, bias))
    y_ref = x @ weight.T + bias[None, :]
    assert y.shape == (batch, out_features)
    assert jnp.allclose(y, y_ref, atol=1e-5, rtol=1e-5)

    # --- second test: non-power-of-two K/N (divisor tiles, megacore N split),
    #     no-bias variant ------------------------------------------------------
    b2, k2, n2 = 24, 640, 384
    x2 = jax.random.normal(k_x2, (b2, k2), dtype=jnp.float32)
    w2, _ = init_linear_params(k_p2, k2, n2, bias=False)
    y2 = jax.block_until_ready(linear_forward(x2, w2, None))
    y2_ref = x2 @ w2.T
    assert y2.shape == (b2, n2)
    assert jnp.allclose(y2, y2_ref, atol=1e-4, rtol=1e-4)

    print("KERNEL_OK")
</pallas_src>

<mosaic_0001>
module attributes {stable_mosaic.version = 11 : i64} {
  func.func @_linear_kernel_bias(%arg0: i32, %arg1: i32, %arg2: i32, %arg3: memref<8x128xf32, #tpu.memory_space<vmem>>, %arg4: memref<128x128xf32, #tpu.memory_space<vmem>>, %arg5: memref<1x128xf32, #tpu.memory_space<vmem>>, %arg6: memref<8x128xf32, #tpu.memory_space<vmem>>) attributes {dimension_semantics = [#tpu.dimension_semantics<parallel>, #tpu.dimension_semantics<parallel>, #tpu.dimension_semantics<arbitrary>], iteration_bounds = array<i64: 1, 1, 1>, scalar_prefetch = 0 : i64, scratch_operands = 0 : i64, tpu.core_type = #tpu.core_type<tc>, window_params = [{transform_indices = @transform_0, window_bounds = array<i64: 8, 128>}, {transform_indices = @transform_1, window_bounds = array<i64: 128, 128>}, {transform_indices = @transform_2, window_bounds = array<i64: 1, 128>}, {transform_indices = @transform_3, window_bounds = array<i64: 8, 128>}]} {
    %c0_i32 = arith.constant 0 : i32
    %0 = arith.cmpi eq, %arg2, %c0_i32 : i32
    %1 = arith.extui %0 : i1 to i32
    %c0_i32_0 = arith.constant 0 : i32
    %2 = arith.cmpi ne, %1, %c0_i32_0 : i32
    scf.if %2 {
      %c0_8 = arith.constant 0 : index
      %c0_9 = arith.constant 0 : index
      %9 = vector.load %arg5[%c0_8, %c0_9] : memref<1x128xf32, #tpu.memory_space<vmem>>, vector<1x128xf32>
      %10 = vector.shape_cast %9 : vector<1x128xf32> to vector<1x128xf32>
      %11 = vector.broadcast %10 : vector<1x128xf32> to vector<8x128xf32>
      %c0_10 = arith.constant 0 : index
      %c0_11 = arith.constant 0 : index
      %12 = vector.load %arg6[%c0_10, %c0_11] : memref<8x128xf32, #tpu.memory_space<vmem>>, vector<8x128xf32>
      tpu.vector_store %arg6[%c0_10, %c0_11], %11 {strides = array<i32>} : memref<8x128xf32, #tpu.memory_space<vmem>>, vector<8x128xf32>,
    } else {
    }
    %c0 = arith.constant 0 : index
    %c0_1 = arith.constant 0 : index
    %3 = vector.load %arg6[%c0, %c0_1] : memref<8x128xf32, #tpu.memory_space<vmem>>, vector<8x128xf32>
    %c0_2 = arith.constant 0 : index
    %c0_3 = arith.constant 0 : index
    %4 = vector.load %arg3[%c0_2, %c0_3] : memref<8x128xf32, #tpu.memory_space<vmem>>, vector<8x128xf32>
    %c0_4 = arith.constant 0 : index
    %c0_5 = arith.constant 0 : index
    %5 = vector.load %arg4[%c0_4, %c0_5] : memref<128x128xf32, #tpu.memory_space<vmem>>, vector<128x128xf32>
    %cst = arith.constant dense<0.000000e+00> : vector<8x128xf32>
    %6 = tpu.matmul %4, %5, %cst {dimension_numbers = #tpu.dot_dimension_numbers<[1], [0], [0], [1], [0, 0, 1, 1], [], []>} : vector<8x128xf32>, vector<128x128xf32>, vector<8x128xf32> -> vector<8x128xf32>
    %7 = arith.addf %3, %6 : vector<8x128xf32>
    %c0_6 = arith.constant 0 : index
    %c0_7 = arith.constant 0 : index
    %8 = vector.load %arg6[%c0_6, %c0_7] : memref<8x128xf32, #tpu.memory_space<vmem>>, vector<8x128xf32>
    tpu.vector_store %arg6[%c0_6, %c0_7], %7 {strides = array<i32>} : memref<8x128xf32, #tpu.memory_space<vmem>>, vector<8x128xf32>,
    return
  }
  func.func @transform_0(%arg0: i32, %arg1: i32, %arg2: i32) -> (i32, i32) {
    %c0_i32 = arith.constant 0 : i32
    return %arg0, %arg2 : i32, i32
  }
  func.func @transform_1(%arg0: i32, %arg1: i32, %arg2: i32) -> (i32, i32) {
    %c0_i32 = arith.constant 0 : i32
    return %arg2, %arg1 : i32, i32
  }
  func.func @transform_2(%arg0: i32, %arg1: i32, %arg2: i32) -> (i32, i32) {
    %c0_i32 = arith.constant 0 : i32
    %c0_i32_0 = arith.constant 0 : i32
    return %c0_i32, %arg1 : i32, i32
  }
  func.func @transform_3(%arg0: i32, %arg1: i32, %arg2: i32) -> (i32, i32) {
    %c0_i32 = arith.constant 0 : i32
    return %arg0, %arg1 : i32, i32
  }
}

</mosaic_0001>

<llo_original>
// kernel: linear_forward.1
$region0: #{linear_forward.1}
  #allocation0 [shape = 'u32[]', space=smem, size = 0x4, offset = 0x4, fixed_abs, tag = 'smem constant byte address 0x4 - core index']
  #allocation1 [shape = 'u32[144,128]{1,0:T(1,128)}', space=vmem, size = 0x12000, scoped, tag = 'internal scratch']
  %s0 = inlined_call_operand.vmem [shape: f32[8,128], index: 0, kind: input, shape index: {}]
  %s1 = inlined_call_operand.vmem [shape: f32[128,128], index: 1, kind: input, shape index: {}]
  %s2 = inlined_call_operand.vmem [shape: f32[1,128], index: 2, kind: input, shape index: {}]
  %s3 = inlined_call_operand.hbm [shape: f32[8,128], index: 3, kind: output, shape index: {}]
  %s4 = sld [smem:[#allocation0]]
  $region26: #{linear_forward.1} parent=0
    _
  %s6 = ssub.s32 1, %s4
  %s7 = scalar_select 0, %s6, %s4
  $region1: #{linear_forward.1} parent=0
    #allocation2 [shape = 'u8[4096]{0}', space=vmem, size = 0x1000, scoped, tag = 'output window, operand 0, single buffered']
    #allocation3 [shape = 's32[1]{0}', space=sflag, size = 0x4, scoped, tag = 'scoped memory for linear_forward.1']
    %8 = vsyncpa [#allocation3], 0
    // Predicated region
    $region2: #{linear_forward.1} parent=1 // pred_check
      _
    $region3: #{linear_forward.1} parent=1 // pred_check_branch
      %10 = sbr.rel (0) target = $region5
    $region4: #{linear_forward.1} parent=1 // pred_region
      _
    $region5: #{linear_forward.1} parent=1 // pred_fallthru
      _
    // Predicated region
    $region6: #{linear_forward.1} parent=1 // pred_check
      _
    $region7: #{linear_forward.1} parent=1 // pred_check_branch
      %12 = sbr.rel (0) target = $region9
    $region8: #{linear_forward.1} parent=1 // pred_region
      _
    $region9: #{linear_forward.1} parent=1 // pred_fallthru
      _
    // Predicated region
    $region10: #{linear_forward.1} parent=1 // pred_check
      _
    $region11: #{linear_forward.1} parent=1 // pred_check_branch
      %14 = sbr.rel (0) target = $region13
    $region12: #{linear_forward.1} parent=1 // pred_region
      _
    $region13: #{linear_forward.1} parent=1 // pred_fallthru
      _
    %p15 = scmp.eq.s32.totalorder 0, 0
    // Predicated region
    $region14: #{linear_forward.1} parent=1 // pred_check
      %p16 = pneg %p15
    $region15: #{linear_forward.1} parent=1 // pred_check_branch
      %18 = sbr.rel (%p16) target = $region17
    $region16: #{linear_forward.1} parent=1 // pred_region
      %v19 = vld [vmem:[%s2] sm:$0x1]
      %v21 = vlaneseq
      %v22 = vshrl.u32 %v21, 7
      %v23 = vsub.s32 0, %v22
      %v24 = vrot.slane %v19, %v23
      %26 = vst [vmem:[#allocation2] sm:$0xff] %v24
    $region17: #{linear_forward.1} parent=1 // pred_fallthru
      _
    %v27 = vld [vmem:[#allocation2] sm:$0xff]
    %v28 = vld [vmem:[%s0] sm:$0xff]
    %v29 = vld [vmem:[%s1] sm:$0xff]
    %v30 = vld [vmem:[%s1 + $0x8] sm:$0xff]
    %v31 = vld [vmem:[%s1 + $0x10] sm:$0xff]
    %v32 = vld [vmem:[%s1 + $0x18] sm:$0xff]
    %v33 = vld [vmem:[%s1 + $0x20] sm:$0xff]
    %v34 = vld [vmem:[%s1 + $0x28] sm:$0xff]
    %v35 = vld [vmem:[%s1 + $0x30] sm:$0xff]
    %v36 = vld [vmem:[%s1 + $0x38] sm:$0xff]
    %v37 = vld [vmem:[%s1 + $0x40] sm:$0xff]
    %v38 = vld [vmem:[%s1 + $0x48] sm:$0xff]
    %v39 = vld [vmem:[%s1 + $0x50] sm:$0xff]
    %v40 = vld [vmem:[%s1 + $0x58] sm:$0xff]
    %v41 = vld [vmem:[%s1 + $0x60] sm:$0xff]
    %v42 = vld [vmem:[%s1 + $0x68] sm:$0xff]
    %v43 = vld [vmem:[%s1 + $0x70] sm:$0xff]
    %v44 = vld [vmem:[%s1 + $0x78] sm:$0xff]
    %45 = vmatprep.subr.mxu0 0.0
    %46 = vmatpush1.msra.mxu0 %v29
    %47 = vmatprep.subr.mxu0 0.0
    %48 = vmatpush1.msra.mxu0 %v30
    %49 = vmatprep.subr.mxu0 0.0
    %50 = vmatpush1.msra.mxu0 %v31
    %51 = vmatprep.subr.mxu0 0.0
    %52 = vmatpush1.msra.mxu0 %v32
    %53 = vmatprep.subr.mxu0 0.0
    %54 = vmatpush1.msra.mxu0 %v33
    %55 = vmatprep.subr.mxu0 0.0
    %56 = vmatpush1.msra.mxu0 %v34
    %57 = vmatprep.subr.mxu0 0.0
    %58 = vmatpush1.msra.mxu0 %v35
    %59 = vmatprep.subr.mxu0 0.0
    %60 = vmatpush1.msra.mxu0 %v36
    %61 = vmatprep.subr.mxu0 0.0
    %62 = vmatpush1.msra.mxu0 %v37
    %63 = vmatprep.subr.mxu0 0.0
    %64 = vmatpush1.msra.mxu0 %v38
    %65 = vmatprep.subr.mxu0 0.0
    %66 = vmatpush1.msra.mxu0 %v39
    %67 = vmatprep.subr.mxu0 0.0
    %68 = vmatpush1.msra.mxu0 %v40
    %69 = vmatprep.subr.mxu0 0.0
    %70 = vmatpush1.msra.mxu0 %v41
    %71 = vmatprep.subr.mxu0 0.0
    %72 = vmatpush1.msra.mxu0 %v42
    %73 = vmatprep.subr.mxu0 0.0
    %74 = vmatpush1.msra.mxu0 %v43
    %75 = vmatprep.subr.mxu0 0.0
    %76 = vmatpush1.msra.mxu0 %v44
    %77 = vmatprep.subr.mxu0 0.0
    %78 = vmatpush1.msra.mxu0 0.0
    %79 = vmatprep.subr.mxu0 0.0
    %80 = vmatpush1.msra.mxu0 0.0
    %81 = vmatprep.subr.mxu0 0.0
    %82 = vmatpush1.msra.mxu0 0.0
    %83 = vmatprep.subr.mxu0 0.0
    %84 = vmatpush1.msra.mxu0 0.0
    %85 = vmatprep.subr.mxu0 0.0
    %86 = vmatpush1.msra.mxu0 0.0
    %87 = vmatprep.subr.mxu0 0.0
    %88 = vmatpush1.msra.mxu0 0.0
    %89 = vmatprep.subr.mxu0 0.0
    %90 = vmatpush1.msra.mxu0 0.0
    %91 = vmatprep.subr.mxu0 0.0
    %92 = vmatpush1.msra.mxu0 0.0
    %93 = vmatprep.subr.mxu0 0.0
    %94 = vmatpush1.msra.mxu0 0.0
    %95 = vmatprep.subr.mxu0 0.0
    %96 = vmatpush1.msra.mxu0 0.0
    %97 = vmatprep.subr.mxu0 0.0
    %98 = vmatpush1.msra.mxu0 0.0
    %99 = vmatprep.subr.mxu0 0.0
    %100 = vmatpush1.msra.mxu0 0.0
    %101 = vmatprep.subr.mxu0 0.0
    %102 = vmatpush1.msra.mxu0 0.0
    %103 = vmatprep.subr.mxu0 0.0
    %104 = vmatpush1.msra.mxu0 0.0
    %105 = vmatprep.subr.mxu0 0.0
    %106 = vmatpush1.msra.mxu0 0.0
    %107 = vmatprep.subr.mxu0 0.0
    %108 = vmatpush1.msra.mxu0 0.0
    %109 = vmatprep.mubr.f32.mxu0 0.0
    %110 = vmatmul.mubr.f32.gmra.mrb[0].mxu0 %v28
    %v111 = vpop.f32.mrb[0].mxu0
    %v112 = vadd.f32 0.0, %v111
    %v113 = vpop.f32.mrb[0].mxu0
    %114 = vdwg.mxu0
    %v115 = vadd.f32 %v27, %v112
    %116 = vst [vmem:[#allocation2] sm:$0xff] %v115
    // Predicated region
    $region18: #{linear_forward.1} parent=1 // pred_check
      _
    $region19: #{linear_forward.1} parent=1 // pred_check_branch
      %118 = sbr.rel (0) target = $region21
    $region20: #{linear_forward.1} parent=1 // pred_region
      %s120 = ssub.s32 128, 128
      %121 = vsyncadd [#allocation3], %s120
      %s123 = sshll.u32 [#allocation2], 4
      %s124 = int_to_ptr.vmem [resolvable:$true] %s123
      %126 = dma.vmem_to_hbm [thread:$0]  %s124, 128, %s3, [#allocation3]
    $region21: #{linear_forward.1} parent=1 // pred_fallthru
      _
    // Predicated region
    $region22: #{linear_forward.1} parent=1 // pred_check
      _
    $region23: #{linear_forward.1} parent=1 // pred_check_branch
      %128 = sbr.rel (0) target = $region25
    $region24: #{linear_forward.1} parent=1 // pred_region
      %129 = dma.done [#allocation3], 128
    $region25: #{linear_forward.1} parent=1 // pred_fallthru
      _
    %130 = vsyncpa [#allocation3], 1

</llo_original>
